<compile_context>
chip_gen: v7x
topology: tpu7x:2x2x1
jax: 0.10.0
libtpu: 0.0.40
codegen_flags: <defaults>
</compile_context>

<pallas_src>
import functools

import jax
import jax.numpy as jnp
from jax.experimental import pallas as pl
from jax.experimental.pallas import tpu as pltpu


# ---------------------------------------------------------------------------
# Pallas kernel: fused (cond, uncond) denoiser branches + folded CFG combine
# ---------------------------------------------------------------------------
def cfg_denoise_kernel(x_ref, w1t_ref, w2t_ref, bias_ref, o_ref, *, cond_scale):
    # x_ref    : VMEM (1, C, HW)   bf16  -- one batch element, HW on lanes
    # w1t_ref  : VMEM (HID, C)     bf16  -- W1^T
    # w2t_ref  : VMEM (C, HID)     bf16  -- W2^T
    # bias_ref : VMEM (1, HID, 2)  f32   -- [...,0] cond bias, [...,1] uncond bias
    # o_ref    : VMEM (1, C, HW)   f32
    xb = x_ref[0]                                               # (C, HW) bf16

    # Shared pre-activation for both branches: pre^T = W1^T @ x^T  (HID, HW) f32
    pre = jnp.dot(w1t_ref[...], xb, preferred_element_type=jnp.float32)

    bias = bias_ref[0]                                          # (HID, 2) f32
    h_c = pre + bias[:, 0:1]                                    # lane-broadcast
    h_u = pre + bias[:, 1:2]
    h_c = h_c * jax.nn.sigmoid(h_c)                             # silu (f32, EUP)
    h_u = h_u * jax.nn.sigmoid(h_u)

    # CFG combine folded BEFORE the second projection (exact by linearity of W2).
    h_mix = h_u + cond_scale * (h_c - h_u)                      # (HID, HW) f32

    # out^T = W2^T @ h_mix^T  -> (C, HW), lane-dense store.
    o_ref[0] = jnp.dot(w2t_ref[...], h_mix.astype(jnp.bfloat16),
                       preferred_element_type=jnp.float32)


# ---------------------------------------------------------------------------
# Glue: parameters, timestep embedding, pallas_call wrapper
# ---------------------------------------------------------------------------
def make_params(key, channels, hidden, cond_dim, t_emb_dim):
    k1, k2, k3, k4 = jax.random.split(key, 4)
    scale = 0.1
    return {
        "w1": scale * jax.random.normal(k1, (channels, hidden), jnp.float32),
        "w2": scale * jax.random.normal(k2, (hidden, channels), jnp.float32),
        "wt": scale * jax.random.normal(k3, (t_emb_dim, hidden), jnp.float32),
        "wc": scale * jax.random.normal(k4, (cond_dim, hidden), jnp.float32),
        "b0": jnp.zeros((hidden,), jnp.float32),
    }


def timestep_embedding(t, dim):
    # standard sinusoidal embedding, t: (N,)
    half = dim // 2
    freqs = jnp.exp(
        -jnp.log(10000.0) * jnp.arange(half, dtype=jnp.float32) / half
    )
    args = t.astype(jnp.float32)[:, None] * freqs[None, :]
    return jnp.concatenate([jnp.cos(args), jnp.sin(args)], axis=-1)  # (N, dim)


def custom_noise_predictor_forward(params, x, timestep, cond, uncond, cond_scale):
    """x: (N, C, H, W) float32 (NCHW, PyTorch convention)."""
    N, C, H, W = x.shape
    HW = H * W
    HID = params["w1"].shape[1]

    # NCHW-native: (N, C, H*W) -- pure reshape, HW lands on the lane axis.
    x_flat = x.reshape(N, C, HW).astype(jnp.bfloat16)
    w1t = params["w1"].T.astype(jnp.bfloat16)                 # (HID, C)
    w2t = params["w2"].T.astype(jnp.bfloat16)                 # (C, HID)

    # Per-batch conditioning biases (tiny glue matmuls); t-projection computed once.
    t_emb = timestep_embedding(timestep, params["wt"].shape[0])    # (N, T)
    t_proj = t_emb @ params["wt"]                                  # (N, HID)
    bias_c = t_proj + cond @ params["wc"] + params["b0"]
    bias_u = t_proj + uncond @ params["wc"] + params["b0"]
    bias = jnp.stack([bias_c, bias_u], axis=-1).astype(jnp.float32)  # (N, HID, 2)

    kernel = functools.partial(cfg_denoise_kernel, cond_scale=float(cond_scale))

    out_flat = pl.pallas_call(
        kernel,
        out_shape=jax.ShapeDtypeStruct((N, C, HW), jnp.float32),
        grid=(N,),
        in_specs=[
            pl.BlockSpec((1, C, HW), lambda b: (b, 0, 0)),     # x (lane-dense HW)
            pl.BlockSpec((HID, C), lambda b: (0, 0)),          # W1^T
            pl.BlockSpec((C, HID), lambda b: (0, 0)),          # W2^T
            pl.BlockSpec((1, HID, 2), lambda b: (b, 0, 0)),    # stacked biases
        ],
        out_specs=pl.BlockSpec((1, C, HW), lambda b: (b, 0, 0)),
        compiler_params=pltpu.CompilerParams(
            dimension_semantics=("parallel",)                  # N steps -> 2 TCs on v7x
        ),
    )(x_flat, w1t, w2t, bias)

    # (N, C, H*W) -> NCHW: pure reshape, no transpose / extra HBM pass.
    return out_flat.reshape(N, C, H, W)


def reference_forward(params, x, timestep, cond, uncond, cond_scale):
    """Pure-JAX reference (unfused CFG: two explicit branches), bf16-matched inputs."""
    N, C, H, W = x.shape
    x_flat = jnp.transpose(x, (0, 2, 3, 1)).reshape(N, H * W, C).astype(jnp.bfloat16)
    w1 = params["w1"].astype(jnp.bfloat16)
    w2 = params["w2"].astype(jnp.bfloat16)

    t_emb = timestep_embedding(timestep, params["wt"].shape[0])
    t_proj = t_emb @ params["wt"]
    bias_c = t_proj + cond @ params["wc"] + params["b0"]
    bias_u = t_proj + uncond @ params["wc"] + params["b0"]

    def branch(bias):
        pre = jnp.einsum("npc,ch->nph", x_flat, w1,
                         preferred_element_type=jnp.float32)
        h = pre + bias[:, None, :]
        h = h * jax.nn.sigmoid(h)
        return jnp.einsum("nph,hc->npc", h.astype(jnp.bfloat16), w2,
                          preferred_element_type=jnp.float32)

    out_c = branch(bias_c)
    out_u = branch(bias_u)
    out = out_u + cond_scale * (out_c - out_u)
    return jnp.transpose(out.reshape(N, H, W, C), (0, 3, 1, 2))


if __name__ == "__main__":
    N, C, H, W = 2, 4, 16, 16
    COND_DIM, HIDDEN, T_EMB = 32, 32, 16

    key = jax.random.PRNGKey(0)
    kp, kx, kt, kc, ku = jax.random.split(key, 5)

    params = make_params(kp, C, HIDDEN, COND_DIM, T_EMB)
    x = jax.random.normal(kx, (N, C, H, W), jnp.float32)
    timestep = jax.random.uniform(kt, (N,), jnp.float32, 0.0, 999.0)
    cond = jax.random.normal(kc, (N, COND_DIM), jnp.float32)
    uncond = jax.random.normal(ku, (N, COND_DIM), jnp.float32)
    cond_scale = 7.5

    out = custom_noise_predictor_forward(params, x, timestep, cond, uncond, cond_scale)
    out = jax.block_until_ready(out)

    ref = reference_forward(params, x, timestep, cond, uncond, cond_scale)
    assert out.shape == (N, C, H, W), out.shape

    # bf16 matmuls + folding the CFG combine ahead of W2 (exact algebraically,
    # different rounding point, amplified by cond_scale=7.5) -> compare with a
    # scale-normalized max error instead of a brittle per-element atol.
    denom = jnp.maximum(jnp.max(jnp.abs(ref)), 1.0)
    max_err = float(jnp.max(jnp.abs(out - ref)) / denom)
    assert max_err < 3e-2, f"mismatch vs reference: normalized max err = {max_err}"

    print("KERNEL_OK")
</pallas_src>

<mosaic_0001>
module attributes {stable_mosaic.version = 11 : i64} {
  func.func @cfg_denoise_kernel(%arg0: i32, %arg1: memref<1x4x256xbf16, #tpu.memory_space<vmem>>, %arg2: memref<32x4xbf16, #tpu.memory_space<vmem>>, %arg3: memref<4x32xbf16, #tpu.memory_space<vmem>>, %arg4: memref<1x32x2xf32, #tpu.memory_space<vmem>>, %arg5: memref<1x4x256xf32, #tpu.memory_space<vmem>>) attributes {dimension_semantics = [#tpu.dimension_semantics<parallel>], iteration_bounds = array<i64: 2>, scalar_prefetch = 0 : i64, scratch_operands = 0 : i64, tpu.core_type = #tpu.core_type<tc>, window_params = [{transform_indices = @transform_0, window_bounds = array<i64: 1, 4, 256>}, {pipeline_mode = #tpu.pipeline_mode<synchronous>, transform_indices = @transform_1, window_bounds = array<i64: 32, 4>}, {pipeline_mode = #tpu.pipeline_mode<synchronous>, transform_indices = @transform_2, window_bounds = array<i64: 4, 32>}, {transform_indices = @transform_3, window_bounds = array<i64: 1, 32, 2>}, {transform_indices = @transform_4, window_bounds = array<i64: 1, 4, 256>}]} {
    %c0 = arith.constant 0 : index
    %c0_0 = arith.constant 0 : index
    %c0_1 = arith.constant 0 : index
    %0 = vector.load %arg1[%c0, %c0_0, %c0_1] : memref<1x4x256xbf16, #tpu.memory_space<vmem>>, vector<1x4x256xbf16>
    %1 = vector.shape_cast %0 : vector<1x4x256xbf16> to vector<4x256xbf16>
    %c0_2 = arith.constant 0 : index
    %c0_3 = arith.constant 0 : index
    %2 = vector.load %arg2[%c0_2, %c0_3] : memref<32x4xbf16, #tpu.memory_space<vmem>>, vector<32x4xbf16>
    %cst = arith.constant dense<0.000000e+00> : vector<32x256xf32>
    %3 = tpu.matmul %2, %1, %cst {dimension_numbers = #tpu.dot_dimension_numbers<[1], [0], [0], [1], [0, 0, 1, 1], [], []>} : vector<32x4xbf16>, vector<4x256xbf16>, vector<32x256xf32> -> vector<32x256xf32>
    %c0_4 = arith.constant 0 : index
    %c0_5 = arith.constant 0 : index
    %c0_6 = arith.constant 0 : index
    %4 = vector.load %arg4[%c0_4, %c0_5, %c0_6] : memref<1x32x2xf32, #tpu.memory_space<vmem>>, vector<1x32x2xf32>
    %5 = vector.shape_cast %4 : vector<1x32x2xf32> to vector<32x2xf32>
    %6 = vector.extract_strided_slice %5 {offsets = [0, 0], sizes = [32, 1], strides = [1, 1]} : vector<32x2xf32> to vector<32x1xf32>
    %7 = vector.broadcast %6 : vector<32x1xf32> to vector<32x256xf32>
    %8 = arith.addf %3, %7 : vector<32x256xf32>
    %9 = vector.extract_strided_slice %5 {offsets = [0, 1], sizes = [32, 1], strides = [1, 1]} : vector<32x2xf32> to vector<32x1xf32>
    %10 = vector.broadcast %9 : vector<32x1xf32> to vector<32x256xf32>
    %11 = arith.addf %3, %10 : vector<32x256xf32>
    %12 = arith.negf %8 : vector<32x256xf32>
    %13 = math.exp %12 : vector<32x256xf32>
    %cst_7 = arith.constant 1.000000e+00 : f32
    %14 = vector.broadcast %cst_7 : f32 to vector<32x256xf32>
    %15 = arith.addf %14, %13 : vector<32x256xf32>
    %16 = arith.divf %14, %15 : vector<32x256xf32>
    %17 = arith.mulf %8, %16 : vector<32x256xf32>
    %18 = arith.negf %11 : vector<32x256xf32>
    %19 = math.exp %18 : vector<32x256xf32>
    %cst_8 = arith.constant 1.000000e+00 : f32
    %20 = vector.broadcast %cst_8 : f32 to vector<32x256xf32>
    %21 = arith.addf %20, %19 : vector<32x256xf32>
    %22 = arith.divf %20, %21 : vector<32x256xf32>
    %23 = arith.mulf %11, %22 : vector<32x256xf32>
    %24 = arith.subf %17, %23 : vector<32x256xf32>
    %cst_9 = arith.constant 7.500000e+00 : f32
    %25 = vector.broadcast %cst_9 : f32 to vector<32x256xf32>
    %26 = arith.mulf %25, %24 : vector<32x256xf32>
    %27 = arith.addf %23, %26 : vector<32x256xf32>
    %c0_10 = arith.constant 0 : index
    %c0_11 = arith.constant 0 : index
    %28 = vector.load %arg3[%c0_10, %c0_11] : memref<4x32xbf16, #tpu.memory_space<vmem>>, vector<4x32xbf16>
    %29 = arith.truncf %27 : vector<32x256xf32> to vector<32x256xbf16>
    %cst_12 = arith.constant dense<0.000000e+00> : vector<4x256xf32>
    %30 = tpu.matmul %28, %29, %cst_12 {dimension_numbers = #tpu.dot_dimension_numbers<[1], [0], [0], [1], [0, 0, 1, 1], [], []>} : vector<4x32xbf16>, vector<32x256xbf16>, vector<4x256xf32> -> vector<4x256xf32>
    %c0_13 = arith.constant 0 : index
    %c0_14 = arith.constant 0 : index
    %c0_15 = arith.constant 0 : index
    %31 = vector.load %arg5[%c0_13, %c0_14, %c0_15] : memref<1x4x256xf32, #tpu.memory_space<vmem>>, vector<1x4x256xf32>
    %32 = vector.shape_cast %31 : vector<1x4x256xf32> to vector<4x256xf32>
    %33 = vector.shape_cast %30 : vector<4x256xf32> to vector<1x4x256xf32>
    tpu.vector_store %arg5[%c0_13, %c0_14, %c0_15], %33 {strides = array<i32>} : memref<1x4x256xf32, #tpu.memory_space<vmem>>, vector<1x4x256xf32>,
    return
  }
  func.func @transform_0(%arg0: i32) -> (i32, i32, i32) {
    %c0_i32 = arith.constant 0 : i32
    %c0_i32_0 = arith.constant 0 : i32
    %c0_i32_1 = arith.constant 0 : i32
    return %arg0, %c0_i32, %c0_i32_0 : i32, i32, i32
  }
  func.func @transform_1(%arg0: i32) -> (i32, i32) {
    %c0_i32 = arith.constant 0 : i32
    %c0_i32_0 = arith.constant 0 : i32
    %c0_i32_1 = arith.constant 0 : i32
    return %c0_i32, %c0_i32_0 : i32, i32
  }
  func.func @transform_2(%arg0: i32) -> (i32, i32) {
    %c0_i32 = arith.constant 0 : i32
    %c0_i32_0 = arith.constant 0 : i32
    %c0_i32_1 = arith.constant 0 : i32
    return %c0_i32, %c0_i32_0 : i32, i32
  }
  func.func @transform_3(%arg0: i32) -> (i32, i32, i32) {
    %c0_i32 = arith.constant 0 : i32
    %c0_i32_0 = arith.constant 0 : i32
    %c0_i32_1 = arith.constant 0 : i32
    return %arg0, %c0_i32, %c0_i32_0 : i32, i32, i32
  }
  func.func @transform_4(%arg0: i32) -> (i32, i32, i32) {
    %c0_i32 = arith.constant 0 : i32
    %c0_i32_0 = arith.constant 0 : i32
    %c0_i32_1 = arith.constant 0 : i32
    return %arg0, %c0_i32, %c0_i32_0 : i32, i32, i32
  }
}

</mosaic_0001>

<llo_original>
// kernel: tpu_custom_call.1
$region0: #{tpu_custom_call.1}
  #allocation0 [shape = 'u32[]', space=smem, size = 0x4, offset = 0x4, fixed_abs, tag = 'smem constant byte address 0x4 - core index']
  #allocation1 [shape = 'u32[144,128]{1,0:T(1,128)}', space=vmem, size = 0x12000, scoped, tag = 'internal scratch']
  %s0 = inlined_call_operand.vmem [shape: bf16[2,4,256], index: 0, kind: input, shape index: {}]
  %s1 = inlined_call_operand.vmem [shape: bf16[32,4], index: 1, kind: input, shape index: {}]
  %s2 = inlined_call_operand.vmem [shape: bf16[4,32], index: 2, kind: input, shape index: {}]
  %s3 = inlined_call_operand.vmem [shape: f32[2,32,2], index: 3, kind: input, shape index: {}]
  %s4 = inlined_call_operand.hbm [shape: f32[2,4,256], index: 4, kind: output, shape index: {}]
  %s5 = sld [smem:[#allocation0]]
  $region49: #{tpu_custom_call.1} parent=0
    _
  %s7 = ssub.s32 1, %s5
  %s8 = scalar_select 0, %s7, %s5
  $region1: #{tpu_custom_call.1} parent=0
    #allocation2 [shape = 'u8[8192]{0}', space=vmem, size = 0x2000, scoped, tag = 'output window, operand 0']
    #allocation3 [shape = 's32[2]{0}', space=sflag, size = 0x8, scoped, tag = 'scoped memory for tpu_custom_call.1']
    %9 = vsyncpa [#allocation3], 0
    %s10 = scalar_lea.sflag [#allocation3], 1
    %11 = vsyncpa %s10, 0
    loop: start=0, step=1, limit=4
    $region2: #{tpu_custom_call.1} parent=1 // loop_pre_header
      _
    $region3: #{tpu_custom_call.1} parent=1 // loop_header
      %s13 = sphi 0, %s17
      %p14 = scmp.ge.s32.totalorder %s13, 4
      %s23 = sphi 0, %s25
      %s26 = sphi 0, %s23
      %s27 = sphi 0, %s26
      %s43 = sphi 0, %s27
      %s47 = sphi 0, %s47
      %s49 = sphi 0, %s47
      %s50 = sphi 0, %s49
      %s64 = sphi 0, %s50
      %s68 = sphi 0, %s68
      %s70 = sphi 0, %s68
      %s71 = sphi 0, %s70
      %s85 = sphi 0, %s71
      %s91 = sphi 0, %s93
      %s94 = sphi 0, %s91
      %s95 = sphi 0, %s94
      %s111 = sphi 0, %s95
      %s117 = sphi 0, %s119
      %s120 = sphi 0, %s117
      %s121 = sphi 0, %s120
      %s137 = sphi 0, %s121
    $region4: #{tpu_custom_call.1} parent=1 // loop_header_branch
      %16 = sbr.rel (%p14) target = $region8
    $region5: #{tpu_custom_call.1} parent=1 // loop_body
      %s18 = ssub.s32 %s13, 1
      %s19 = ssub.s32 %s13, 2
      %s20 = sadd.s32 %s13, 1
      %s21 = ssub.s32 %s13, %s20
      %p22 = scmp.eq.s32.totalorder %s21, 0
      %s24 = sadd.s32 %s23, 1
      %s25 = scalar_select %p22, %s23, %s24
      %p28 = pneg %p22
      %p29 = scmp.eq.s32.totalorder %s13, 1
      %p30 = por %p28, %p29
      %p31 = scmp.ne.s32.totalorder %s23, %s26
      %p32 = scmp.eq.s32.totalorder %s13, 0
      %p33 = por %p31, %p32
      %p34 = scmp.ne.s32.totalorder %s23, %s26
      %p35 = scmp.eq.s32.totalorder %s18, 1
      %p36 = por %p34, %p35
      %p37 = scmp.ne.s32.totalorder %s26, %s27
      %p38 = scmp.eq.s32.totalorder %s18, 0
      %p39 = por %p37, %p38
      %p40 = scmp.ne.s32.totalorder %s26, %s27
      %p41 = scmp.eq.s32.totalorder %s19, 1
      %p42 = por %p40, %p41
      %p44 = scmp.ne.s32.totalorder %s27, %s43
      %p45 = scmp.eq.s32.totalorder %s19, 0
      %p46 = por %p44, %p45
      %s48 = sadd.s32 %s47, 1
      %p51 = scmp.eq.s32.totalorder %s13, 1
      %p52 = scmp.ne.s32.totalorder %s47, %s49
      %p53 = scmp.eq.s32.totalorder %s13, 0
      %p54 = por %p52, %p53
      %p55 = scmp.ne.s32.totalorder %s47, %s49
      %p56 = scmp.eq.s32.totalorder %s18, 1
      %p57 = por %p55, %p56
      %p58 = scmp.ne.s32.totalorder %s49, %s50
      %p59 = scmp.eq.s32.totalorder %s18, 0
      %p60 = por %p58, %p59
      %p61 = scmp.ne.s32.totalorder %s49, %s50
      %p62 = scmp.eq.s32.totalorder %s19, 1
      %p63 = por %p61, %p62
      %p65 = scmp.ne.s32.totalorder %s50, %s64
      %p66 = scmp.eq.s32.totalorder %s19, 0
      %p67 = por %p65, %p66
      %s69 = sadd.s32 %s68, 1
      %p72 = scmp.eq.s32.totalorder %s13, 1
      %p73 = scmp.ne.s32.totalorder %s68, %s70
      %p74 = scmp.eq.s32.totalorder %s13, 0
      %p75 = por %p73, %p74
      %p76 = scmp.ne.s32.totalorder %s68, %s70
      %p77 = scmp.eq.s32.totalorder %s18, 1
      %p78 = por %p76, %p77
      %p79 = scmp.ne.s32.totalorder %s70, %s71
      %p80 = scmp.eq.s32.totalorder %s18, 0
      %p81 = por %p79, %p80
      %p82 = scmp.ne.s32.totalorder %s70, %s71
      %p83 = scmp.eq.s32.totalorder %s19, 1
      %p84 = por %p82, %p83
      %p86 = scmp.ne.s32.totalorder %s71, %s85
      %p87 = scmp.eq.s32.totalorder %s19, 0
      %p88 = por %p86, %p87
      %s89 = ssub.s32 %s13, %s20
      %p90 = scmp.eq.s32.totalorder %s89, 0
      %s92 = sadd.s32 %s91, 1
      %s93 = scalar_select %p90, %s91, %s92
      %p96 = pneg %p90
      %p97 = scmp.eq.s32.totalorder %s13, 1
      %p98 = por %p96, %p97
      %p99 = scmp.ne.s32.totalorder %s91, %s94
      %p100 = scmp.eq.s32.totalorder %s13, 0
      %p101 = por %p99, %p100
      %p102 = scmp.ne.s32.totalorder %s91, %s94
      %p103 = scmp.eq.s32.totalorder %s18, 1
      %p104 = por %p102, %p103
      %p105 = scmp.ne.s32.totalorder %s94, %s95
      %p106 = scmp.eq.s32.totalorder %s18, 0
      %p107 = por %p105, %p106
      %p108 = scmp.ne.s32.totalorder %s94, %s95
      %p109 = scmp.eq.s32.totalorder %s19, 1
      %p110 = por %p108, %p109
      %p112 = scmp.ne.s32.totalorder %s95, %s111
      %p113 = scmp.eq.s32.totalorder %s19, 0
      %p114 = por %p112, %p113
      %s115 = ssub.s32 %s13, %s20
      %p116 = scmp.eq.s32.totalorder %s115, 0
      %s118 = sadd.s32 %s117, 1
      %s119 = scalar_select %p116, %s117, %s118
      %p122 = pneg %p116
      %p123 = scmp.eq.s32.totalorder %s13, 1
      %p124 = por %p122, %p123
      %p125 = scmp.ne.s32.totalorder %s117, %s120
      %p126 = scmp.eq.s32.totalorder %s13, 0
      %p127 = por %p125, %p126
      %p128 = scmp.ne.s32.totalorder %s117, %s120
      %p129 = scmp.eq.s32.totalorder %s18, 1
      %p130 = por %p128, %p129
      %p131 = scmp.ne.s32.totalorder %s120, %s121
      %p132 = scmp.eq.s32.totalorder %s18, 0
      %p133 = por %p131, %p132
      %p134 = scmp.ne.s32.totalorder %s120, %s121
      %p135 = scmp.eq.s32.totalorder %s19, 1
      %p136 = por %p134, %p135
      %p138 = scmp.ne.s32.totalorder %s121, %s137
      %p139 = scmp.eq.s32.totalorder %s19, 0
      %p140 = por %p138, %p139
      %p141 = scmp.le.s32.totalorder 1, %s13
      %p142 = scmp.lt.s32.totalorder %s13, 3
      %p143 = pnand %p141, %p142
      %p144 = pneg %p143
      // Predicated region
      $region9: #{tpu_custom_call.1} parent=5 // pred_check
        _
      $region10: #{tpu_custom_call.1} parent=5 // pred_check_branch
        %146 = sbr.rel (%p143) target = $region12
      $region11: #{tpu_custom_call.1} parent=5 // pred_region
        %s147 = ssub.s32 %s13, 1
        // Predicated region
        $region13: #{tpu_custom_call.1} parent=11 // pred_check
          %p148 = pneg %p60
        $region14: #{tpu_custom_call.1} parent=11 // pred_check_branch
          %150 = sbr.rel (%p148) target = $region16
        $region15: #{tpu_custom_call.1} parent=11 // pred_region
          _
        $region16: #{tpu_custom_call.1} parent=11 // pred_fallthru
          _
        // Predicated region
        $region17: #{tpu_custom_call.1} parent=11 // pred_check
          %p151 = pneg %p81
        $region18: #{tpu_custom_call.1} parent=11 // pred_check_branch
          %153 = sbr.rel (%p151) target = $region20
        $region19: #{tpu_custom_call.1} parent=11 // pred_region
          _
        $region20: #{tpu_custom_call.1} parent=11 // pred_fallthru
          _
      $region12: #{tpu_custom_call.1} parent=5 // pred_fallthru
        _
      %p154 = scmp.lt.s32.totalorder %s13, 2
      // Predicated region
      $region21: #{tpu_custom_call.1} parent=5 // pred_check
        %p155 = pneg %p154
      $region22: #{tpu_custom_call.1} parent=5 // pred_check_branch
        %157 = sbr.rel (%p155) target = $region24
      $region23: #{tpu_custom_call.1} parent=5 // pred_region
        // Predicated region
        $region25: #{tpu_custom_call.1} parent=23 // pred_check
          %p158 = pneg %p33
        $region26: #{tpu_custom_call.1} parent=23 // pred_check_branch
          %160 = sbr.rel (%p158) target = $region28
        $region27: #{tpu_custom_call.1} parent=23 // pred_region
          %p161 = scmp.lt.s32.totalorder %s13, 1
          %s162 = scalar_select %p161, %s13, 1
          %s163 = smul.addr %s162, 2
          %s164 = smul.addr %s163, 2
          %s165 = scalar_lea.vmem %s0, %s164
        $region28: #{tpu_custom_call.1} parent=23 // pred_fallthru
          _
        // Predicated region
        $region29: #{tpu_custom_call.1} parent=23 // pred_check
          %p166 = pneg %p101
        $region30: #{tpu_custom_call.1} parent=23 // pred_check_branch
          %168 = sbr.rel (%p166) target = $region32
        $region31: #{tpu_custom_call.1} parent=23 // pred_region
          %p169 = scmp.lt.s32.totalorder %s13, 1
          %s170 = scalar_select %p169, %s13, 1
          %s171 = smul.addr %s170, 4
          %s172 = smul.addr %s171, 8
          %s173 = scalar_lea.vmem %s3, %s172
        $region32: #{tpu_custom_call.1} parent=23 // pred_fallthru
          _
      $region24: #{tpu_custom_call.1} parent=5 // pred_fallthru
        _
      %p174 = scmp.le.s32.totalorder 1, %s13
      %p175 = scmp.lt.s32.totalorder %s13, 3
      %p176 = pnand %p174, %p175
      %p177 = pneg %p176
      // Predicated region
      $region33: #{tpu_custom_call.1} parent=5 // pred_check
        _
      $region34: #{tpu_custom_call.1} parent=5 // pred_check_branch
        %179 = sbr.rel (%p176) target = $region36
      $region35: #{tpu_custom_call.1} parent=5 // pred_region
        %s180 = ssub.s32 %s13, 1
        %p181 = scmp.lt.s32.totalorder %s18, 1
        %s182 = scalar_select %p181, %s18, 1
        %s183 = smul.addr %s182, 2
        %s184 = smul.addr %s183, 2
        %s185 = scalar_lea.vmem %s0, %s184
        %p186 = pneg %p39
        %p187 = pneg %p36
        %p188 = pneg %p60
        %p189 = pneg %p57
        %p190 = pneg %p81
        %p191 = pneg %p78
        %p192 = scmp.lt.s32.totalorder %s18, 1
        %s193 = scalar_select %p192, %s18, 1
        %s194 = smul.addr %s193, 4
        %s195 = smul.addr %s194, 8
        %s196 = scalar_lea.vmem %s3, %s195
        %p197 = pneg %p107
        %p198 = pneg %p104
        %p199 = pneg %p133
        %p200 = pneg %p130
        %s201 = sand.u32 %s120, 1
        %s202 = scalar_lea.sflag [#allocation3], %s201
        %s203 = sand.u32 %s120, 1
        %s204 = smul.addr %s203, 8
        %s205 = scalar_lea.vmem [#allocation2], %s204
        %p206 = scmp.lt.s32.totalorder %s18, 1
        %s207 = scalar_select %p206, %s18, 1
        %s208 = smul.addr %s207, 2
        %s209 = smul.addr %s208, 2
        %s210 = scalar_lea.vmem %s0, %s209
        %p211 = scmp.lt.s32.totalorder %s18, 1
        %s212 = scalar_select %p211, %s18, 1
        %s213 = smul.addr %s212, 4
        %s214 = smul.addr %s213, 8
        %s215 = scalar_lea.vmem %s3, %s214
        %v217 = vld [vmem:[%s210] sm:$0xf]
        %v218 = vld [vmem:[%s1] sm:$0xf]
        %v219 = vld [vmem:[%s1 + $0x4] sm:$0xf]
        %v220 = vld [vmem:[%s1 + $0x8] sm:$0xf]
        %v221 = vld [vmem:[%s1 + $0xc] sm:$0xf]
        %v226 = vunpack.c.l.b16 %v218
        %v227 = vunpack.c.l.b16 %v219
        %v228 = vunpack.c.l.b16 %v220
        %v229 = vunpack.c.l.b16 %v221
        %v230 = vpack.c.b16 %v227, %v226
        %v231 = vpack.c.b16 %v229, %v228
        %v234 = vunpack.c.l.s4 1983009808
        %v235 = vunpack.c.0.s8 %v234
        %v236 = vlaneseq
        %v237 = vshrl.u32 %v236, 7
        %v238 = vsub.s32 %v235, %v237
        %v239 = vrot.slane %v217, %v238
        %v240 = vcombine.high %v239, %v239
        %vm241 = vcmask 31744
        %v243 = vsel %vm241, %v230, 0
        %v246 = vsel %vm241, %v231, 0
        %vm248 = vcmask 1041408
        %v250 = vsel %vm248, %v239, 0
        %v253 = vsel %vm248, %v240, 0
        %255 = vmatprep.subr.bf16.mxu0 %v253
        %256 = vmatpush1.bf16.msra.mxu0 %v250
        %257 = vmatprep.subr.bf16.mxu0 0
        %258 = vmatpush1.bf16.msra.mxu0 0
        %259 = vmatprep.subr.bf16.mxu0 0
        %260 = vmatpush1.bf16.msra.mxu0 0
        %261 = vmatprep.subr.bf16.mxu0 0
        %262 = vmatpush1.bf16.msra.mxu0 0
        %263 = vmatprep.subr.bf16.mxu0 0
        %264 = vmatpush1.bf16.msra.mxu0 0
        %265 = vmatprep.subr.bf16.mxu0 0
        %266 = vmatpush1.bf16.msra.mxu0 0
        %267 = vmatprep.subr.bf16.mxu0 0
        %268 = vmatpush1.bf16.msra.mxu0 0
        %269 = vmatprep.subr.bf16.mxu0 0
        %270 = vmatpush1.bf16.msra.mxu0 0
        %271 = vmatprep.subr.bf16.mxu0 0
        %272 = vmatpush1.bf16.msra.mxu0 0
        %273 = vmatprep.subr.bf16.mxu0 0
        %274 = vmatpush1.bf16.msra.mxu0 0
        %275 = vmatprep.subr.bf16.mxu0 0
        %276 = vmatpush1.bf16.msra.mxu0 0
        %277 = vmatprep.subr.bf16.mxu0 0
        %278 = vmatpush1.bf16.msra.mxu0 0
        %279 = vmatprep.subr.bf16.mxu0 0
        %280 = vmatpush1.bf16.msra.mxu0 0
        %281 = vmatprep.subr.bf16.mxu0 0
        %282 = vmatpush1.bf16.msra.mxu0 0
        %283 = vmatprep.subr.bf16.mxu0 0
        %284 = vmatpush1.bf16.msra.mxu0 0
        %285 = vmatprep.subr.bf16.mxu0 0
        %286 = vmatpush1.bf16.msra.mxu0 0
        %287 = vmatprep.mubr.bf16.mxu0 0
        %288 = vmatmul.mubr.bf16.gmra.mrb[0].mxu0 %v243
        %v289 = vpop.f32.mrb[0].mxu0
        %v290 = vadd.f32 0.0, %v289
        %v291 = vpop.f32.mrb[0].mxu0
        %v292 = vadd.f32 0.0, %v291
        %v293 = vpop.f32.mrb[0].mxu0
        %v294 = vadd.f32 0.0, %v293
        %v295 = vpop.f32.mrb[0].mxu0
        %v296 = vadd.f32 0.0, %v295
        %297 = vmatprep.mubr.bf16.mxu0 0
        %298 = vmatmul.mubr.bf16.gmra.mrb[0].mxu0 %v246
        %v299 = vpop.f32.mrb[0].mxu0
        %v300 = vadd.f32 0.0, %v299
        %v301 = vpop.f32.mrb[0].mxu0
        %v302 = vadd.f32 0.0, %v301
        %v303 = vpop.f32.mrb[0].mxu0
        %v304 = vadd.f32 0.0, %v303
        %v305 = vpop.f32.mrb[0].mxu0
        %v306 = vadd.f32 0.0, %v305
        %307 = vdwg.mxu0
        %v308 = vld [vmem:[%s215] sm:$0xff]
        %v309 = vld [vmem:[%s215 + $0x8] sm:$0xff]
        %v310 = vld [vmem:[%s215 + $0x10] sm:$0xff]
        %v311 = vld [vmem:[%s215 + $0x18] sm:$0xff]
        %313 = vset.pattern.permute.xlu0 0
        %314 = vperm.xlu0 %313, %v308
        %v315 = vpop.permute.xlu0 %314
        %318 = vset.pattern.permute.xlu0 0
        %319 = vperm.xlu0 %318, %v309
        %v320 = vpop.permute.xlu0 %319
        %323 = vset.pattern.permute.xlu0 0
        %324 = vperm.xlu0 %323, %v310
        %v325 = vpop.permute.xlu0 %324
        %328 = vset.pattern.permute.xlu0 0
        %329 = vperm.xlu0 %328, %v311
        %v330 = vpop.permute.xlu0 %329
        %v332 = vadd.f32 %v290, %v315
        %v333 = vadd.f32 %v292, %v315
        %v334 = vadd.f32 %v294, %v320
        %v335 = vadd.f32 %v296, %v320
        %v336 = vadd.f32 %v300, %v325
        %v337 = vadd.f32 %v302, %v325
        %v338 = vadd.f32 %v304, %v330
        %v339 = vadd.f32 %v306, %v330
        %340 = vset.pattern.permute.xlu0 1
        %341 = vperm.xlu0 %340, %v308
        %v342 = vpop.permute.xlu0 %341
        %344 = vset.pattern.permute.xlu0 1
        %345 = vperm.xlu0 %344, %v309
        %v346 = vpop.permute.xlu0 %345
        %348 = vset.pattern.permute.xlu0 1
        %349 = vperm.xlu0 %348, %v310
        %v350 = vpop.permute.xlu0 %349
        %352 = vset.pattern.permute.xlu0 1
        %353 = vperm.xlu0 %352, %v311
        %v354 = vpop.permute.xlu0 %353
        %v356 = vadd.f32 %v290, %v342
        %v357 = vadd.f32 %v292, %v342
        %v358 = vadd.f32 %v294, %v346
        %v359 = vadd.f32 %v296, %v346
        %v360 = vadd.f32 %v300, %v350
        %v361 = vadd.f32 %v302, %v350
        %v362 = vadd.f32 %v304, %v354
        %v363 = vadd.f32 %v306, %v354
        %v364 = vxor.u32 %v332, 2147483648
        %v365 = vxor.u32 %v333, 2147483648
        %v366 = vxor.u32 %v334, 2147483648
        %v367 = vxor.u32 %v335, 2147483648
        %v368 = vxor.u32 %v336, 2147483648
        %v369 = vxor.u32 %v337, 2147483648
        %v370 = vxor.u32 %v338, 2147483648
        %v371 = vxor.u32 %v339, 2147483648
        %v372 = vmul.f32 %v364, 1.442695
        %v373 = vpow.pop %v372
        %v374 = vmul.f32 %v365, 1.442695
        %v375 = vpow.pop %v374
        %v376 = vmul.f32 %v366, 1.442695
        %v377 = vpow.pop %v376
        %v378 = vmul.f32 %v367, 1.442695
        %v379 = vpow.pop %v378
        %v380 = vmul.f32 %v368, 1.442695
        %v381 = vpow.pop %v380
        %v382 = vmul.f32 %v369, 1.442695
        %v383 = vpow.pop %v382
        %v384 = vmul.f32 %v370, 1.442695
        %v385 = vpow.pop %v384
        %v386 = vmul.f32 %v371, 1.442695
        %v387 = vpow.pop %v386
        %v388 = vadd.f32 %v373, 1.0
        %v389 = vadd.f32 %v375, 1.0
        %v390 = vadd.f32 %v377, 1.0
        %v391 = vadd.f32 %v379, 1.0
        %v392 = vadd.f32 %v381, 1.0
        %v393 = vadd.f32 %v383, 1.0
        %v394 = vadd.f32 %v385, 1.0
        %v395 = vadd.f32 %v387, 1.0
        %v396 = vrcp.pop %v388
        %v397 = vmul.f32 1.0, %v396
        %v398 = vrcp.pop %v389
        %v399 = vmul.f32 1.0, %v398
        %v400 = vrcp.pop %v390
        %v401 = vmul.f32 1.0, %v400
        %v402 = vrcp.pop %v391
        %v403 = vmul.f32 1.0, %v402
        %v404 = vrcp.pop %v392
        %v405 = vmul.f32 1.0, %v404
        %v406 = vrcp.pop %v393
        %v407 = vmul.f32 1.0, %v406
        %v408 = vrcp.pop %v394
        %v409 = vmul.f32 1.0, %v408
        %v410 = vrcp.pop %v395
        %v411 = vmul.f32 1.0, %v410
        %v412 = vmul.f32 %v332, %v397
        %v413 = vmul.f32 %v333, %v399
        %v414 = vmul.f32 %v334, %v401
        %v415 = vmul.f32 %v335, %v403
        %v416 = vmul.f32 %v336, %v405
        %v417 = vmul.f32 %v337, %v407
        %v418 = vmul.f32 %v338, %v409
        %v419 = vmul.f32 %v339, %v411
        %v420 = vxor.u32 %v356, 2147483648
        %v421 = vxor.u32 %v357, 2147483648
        %v422 = vxor.u32 %v358, 2147483648
        %v423 = vxor.u32 %v359, 2147483648
        %v424 = vxor.u32 %v360, 2147483648
        %v425 = vxor.u32 %v361, 2147483648
        %v426 = vxor.u32 %v362, 2147483648
        %v427 = vxor.u32 %v363, 2147483648
        %v428 = vmul.f32 %v420, 1.442695
        %v429 = vpow.pop %v428
        %v430 = vmul.f32 %v421, 1.442695
        %v431 = vpow.pop %v430
        %v432 = vmul.f32 %v422, 1.442695
        %v433 = vpow.pop %v432
        %v434 = vmul.f32 %v423, 1.442695
        %v435 = vpow.pop %v434
        %v436 = vmul.f32 %v424, 1.442695
        %v437 = vpow.pop %v436
        %v438 = vmul.f32 %v425, 1.442695
        %v439 = vpow.pop %v438
        %v440 = vmul.f32 %v426, 1.442695
        %v441 = vpow.pop %v440
        %v442 = vmul.f32 %v427, 1.442695
        %v443 = vpow.pop %v442
        %v444 = vadd.f32 %v429, 1.0
        %v445 = vadd.f32 %v431, 1.0
        %v446 = vadd.f32 %v433, 1.0
        %v447 = vadd.f32 %v435, 1.0
        %v448 = vadd.f32 %v437, 1.0
        %v449 = vadd.f32 %v439, 1.0
        %v450 = vadd.f32 %v441, 1.0
        %v451 = vadd.f32 %v443, 1.0
        %v452 = vrcp.pop %v444
        %v453 = vmul.f32 1.0, %v452
        %v454 = vrcp.pop %v445
        %v455 = vmul.f32 1.0, %v454
        %v456 = vrcp.pop %v446
        %v457 = vmul.f32 1.0, %v456
        %v458 = vrcp.pop %v447
        %v459 = vmul.f32 1.0, %v458
        %v460 = vrcp.pop %v448
        %v461 = vmul.f32 1.0, %v460
        %v462 = vrcp.pop %v449
        %v463 = vmul.f32 1.0, %v462
        %v464 = vrcp.pop %v450
        %v465 = vmul.f32 1.0, %v464
        %v466 = vrcp.pop %v451
        %v467 = vmul.f32 1.0, %v466
        %v468 = vmul.f32 %v356, %v453
        %v469 = vmul.f32 %v357, %v455
        %v470 = vmul.f32 %v358, %v457
        %v471 = vmul.f32 %v359, %v459
        %v472 = vmul.f32 %v360, %v461
        %v473 = vmul.f32 %v361, %v463
        %v474 = vmul.f32 %v362, %v465
        %v475 = vmul.f32 %v363, %v467
        %v476 = vsub.f32 %v412, %v468
        %v477 = vsub.f32 %v413, %v469
        %v478 = vsub.f32 %v414, %v470
        %v479 = vsub.f32 %v415, %v471
        %v480 = vsub.f32 %v416, %v472
        %v481 = vsub.f32 %v417, %v473
        %v482 = vsub.f32 %v418, %v474
        %v483 = vsub.f32 %v419, %v475
        %v484 = vmul.f32 %v476, 7.5
        %v485 = vmul.f32 %v477, 7.5
        %v486 = vmul.f32 %v478, 7.5
        %v487 = vmul.f32 %v479, 7.5
        %v488 = vmul.f32 %v480, 7.5
        %v489 = vmul.f32 %v481, 7.5
        %v490 = vmul.f32 %v482, 7.5
        %v491 = vmul.f32 %v483, 7.5
        %v492 = vadd.f32 %v468, %v484
        %v493 = vadd.f32 %v469, %v485
        %v494 = vadd.f32 %v470, %v486
        %v495 = vadd.f32 %v471, %v487
        %v496 = vadd.f32 %v472, %v488
        %v497 = vadd.f32 %v473, %v489
        %v498 = vadd.f32 %v474, %v490
        %v499 = vadd.f32 %v475, %v491
        %v500 = vld [vmem:[%s2] sm:$0x3]
        %v501 = vpack.c.bf16 %v494, %v492
        %v502 = vpack.c.bf16 %v495, %v493
        %v503 = vpack.c.bf16 %v498, %v496
        %v504 = vpack.c.bf16 %v499, %v497
        %vm505 = vcmask 261120
        %v507 = vsel %vm505, %v500, 0
        %509 = vmatprep.subr.bf16.mxu0 %v502
        %510 = vmatpush1.bf16.msra.mxu0 %v501
        %511 = vmatprep.subr.bf16.mxu0 %v504
        %512 = vmatpush1.bf16.msra.mxu0 %v503
        %513 = vmatprep.subr.bf16.mxu0 0
        %514 = vmatpush1.bf16.msra.mxu0 0
        %515 = vmatprep.subr.bf16.mxu0 0
        %516 = vmatpush1.bf16.msra.mxu0 0
        %517 = vmatprep.subr.bf16.mxu0 0
        %518 = vmatpush1.bf16.msra.mxu0 0
        %519 = vmatprep.subr.bf16.mxu0 0
        %520 = vmatpush1.bf16.msra.mxu0 0
        %521 = vmatprep.subr.bf16.mxu0 0
        %522 = vmatpush1.bf16.msra.mxu0 0
        %523 = vmatprep.subr.bf16.mxu0 0
        %524 = vmatpush1.bf16.msra.mxu0 0
        %525 = vmatprep.subr.bf16.mxu0 0
        %526 = vmatpush1.bf16.msra.mxu0 0
        %527 = vmatprep.subr.bf16.mxu0 0
        %528 = vmatpush1.bf16.msra.mxu0 0
        %529 = vmatprep.subr.bf16.mxu0 0
        %530 = vmatpush1.bf16.msra.mxu0 0
        %531 = vmatprep.subr.bf16.mxu0 0
        %532 = vmatpush1.bf16.msra.mxu0 0
        %533 = vmatprep.subr.bf16.mxu0 0
        %534 = vmatpush1.bf16.msra.mxu0 0
        %535 = vmatprep.subr.bf16.mxu0 0
        %536 = vmatpush1.bf16.msra.mxu0 0
        %537 = vmatprep.subr.bf16.mxu0 0
        %538 = vmatpush1.bf16.msra.mxu0 0
        %539 = vmatprep.subr.bf16.mxu0 0
        %540 = vmatpush1.bf16.msra.mxu0 0
        %541 = vmatprep.mubr.bf16.mxu0 0
        %542 = vmatmul.mubr.bf16.gmra.mrb[0].mxu0 %v507
        %v543 = vpop.f32.mrb[0].mxu0
        %v544 = vadd.f32 0.0, %v543
        %v545 = vpop.f32.mrb[0].mxu0
        %v546 = vadd.f32 0.0, %v545
        %v547 = vpop.f32.mrb[0].mxu0
        %v548 = vpop.f32.mrb[0].mxu0
        %549 = vdwg.mxu0
        %v552 = vcombine.low %v544, %v546
        %554 = vst [vmem:[%s205] sm:$0xff] %v552
        %s555 = sand.u32 %s120, 1
        %s556 = scalar_lea.sflag [#allocation3], %s555
        %s557 = sand.u32 %s120, 1
        %s558 = smul.addr %s557, 8
        %s559 = scalar_lea.vmem [#allocation2], %s558
        // Predicated region
        $region37: #{tpu_custom_call.1} parent=35 // pred_check
          %p560 = pneg %p130
        $region38: #{tpu_custom_call.1} parent=35 // pred_check_branch
          %562 = sbr.rel (%p560) target = $region40
        $region39: #{tpu_custom_call.1} parent=35 // pred_region
          %s564 = ssub.s32 128, 128
          %565 = vsyncadd %s556, %s564
          %s566 = smul.addr %s18, 2
          %s567 = smul.addr %s566, 64
          %s568 = scalar_lea.hbm %s4, %s567
          %s570 = sshll.u32 %s559, 4
          %s571 = int_to_ptr.vmem [resolvable:$true] %s570
          %573 = dma.vmem_to_hbm [thread:$0]  %s571, 128, %s568, %s556
        $region40: #{tpu_custom_call.1} parent=35 // pred_fallthru
          _
      $region36: #{tpu_custom_call.1} parent=5 // pred_fallthru
        _
      %p574 = scmp.le.s32.totalorder 2, %s13
      // Predicated region
      $region41: #{tpu_custom_call.1} parent=5 // pred_check
        %p575 = pneg %p574
      $region42: #{tpu_custom_call.1} parent=5 // pred_check_branch
        %577 = sbr.rel (%p575) target = $region44
      $region43: #{tpu_custom_call.1} parent=5 // pred_region
        %s578 = ssub.s32 %s13, 2
        // Predicated region
        $region45: #{tpu_custom_call.1} parent=43 // pred_check
          %p579 = pneg %p136
        $region46: #{tpu_custom_call.1} parent=43 // pred_check_branch
          %581 = sbr.rel (%p579) target = $region48
        $region47: #{tpu_custom_call.1} parent=43 // pred_region
          %s582 = sand.u32 %s121, 1
          %s583 = scalar_lea.sflag [#allocation3], %s582
          %s584 = sand.u32 %s121, 1
          %s585 = smul.addr %s584, 8
          %s586 = scalar_lea.vmem [#allocation2], %s585
          %587 = dma.done %s583, 128
        $region48: #{tpu_custom_call.1} parent=43 // pred_fallthru
          _
      $region44: #{tpu_custom_call.1} parent=5 // pred_fallthru
        _
    $region6: #{tpu_custom_call.1} parent=1 // loop_footer
      %s17 = sadd.s32 1, %s13
    $region7: #{tpu_custom_call.1} parent=1 // loop_footer_branch
      %12 = sbr.rel target = $region3
    $region8: #{tpu_custom_call.1} parent=1 // loop_exit
      _
    %588 = vsyncpa [#allocation3], 1
    %s589 = scalar_lea.sflag [#allocation3], 1
    %590 = vsyncpa %s589, 1

</llo_original>
